<compile_context>
chip_gen: v7x
topology: tpu7x:2x2x1
jax: 0.10.0
libtpu: 0.0.40
codegen_flags: <defaults>
</compile_context>

<pallas_src>
import math
import functools

import jax
import jax.numpy as jnp
from jax import lax
from jax.experimental import pallas as pl
from jax.experimental.pallas import tpu as pltpu


_INV_SQRT2 = 1.0 / math.sqrt(2.0)


def _vmem_limit_bytes():
    # Generation-aware scoped-VMEM limit (v5e/v6e: 128 MiB physical, v7x: 64 MiB).
    try:
        cap = getattr(pltpu.get_tpu_info(), "vmem_capacity_bytes", None)
        if cap:
            return int(cap) * 3 // 4
    except Exception:
        pass
    return 48 * 1024 * 1024


_VMEM_LIMIT = _vmem_limit_bytes()


def _round_up(x, m):
    return ((x + m - 1) // m) * m


def _pick_row_tile(n):
    # Largest multiple of 8 dividing n, capped at 256 (MXU-sized M tile; also fine on
    # v5e's 4x128 MXU and keeps plenty of parallel row steps for v7x's two TCs).
    best, t = 8, 8
    while t <= min(n, 256):
        if n % t == 0:
            best = t
        t += 8
    return best


def _pick_inner_tile(i_dim):
    # Largest multiple of 128 dividing the FFN intermediate dim, capped at 512;
    # fall back to the full dim for tiny demo sizes.
    best, t = None, 128
    while t <= min(i_dim, 512):
        if i_dim % t == 0:
            best = t
        t += 128
    return best if best is not None else i_dim


def _gelu(x):
    # erf-based gelu, exactly matching the module's `gelu`.
    # TODO(synk): tanh-approx gelu would ride the EUP slot but changes numerics vs torch.erf.
    return x * 0.5 * (1.0 + lax.erf(x * _INV_SQRT2))


def _layernorm(h, gamma, beta, eps):
    # fp32 LayerNorm over the last dim (fp32_layernorm=True path of the module).
    mean = jnp.mean(h, axis=-1, keepdims=True)
    var = jnp.mean(jnp.square(h - mean), axis=-1, keepdims=True)
    return (h - mean) * lax.rsqrt(var + eps) * gamma + beta


# --------------------------------------------------------------------------- kernels

def _qkv_kernel(x_ref, w_ref, b_ref, o_ref):
    # x: (tm, H) f32, w: (H, 3H) bf16 pre-transposed, b: (1, 3H) f32 -> o: (tm, 3H) bf16.
    x = x_ref[...].astype(jnp.bfloat16)
    acc = jnp.dot(x, w_ref[...], preferred_element_type=jnp.float32) + b_ref[...]
    o_ref[...] = acc.astype(o_ref.dtype)


def _attn_kernel(qkv_ref, m_ref, o_ref, *, num_heads, scale):
    # One batch element, all heads in one block:
    #   qkv: (S, 3H) bf16, m: (1, S) additive mask f32, o: (S, H) bf16 (lane-dense).
    S, H3 = qkv_ref.shape
    H = H3 // 3
    d = H // num_heads
    m = m_ref[...]                                            # (1, S) broadcast over rows
    ctx_heads = []
    for h in range(num_heads):                                # unrolled; all matmuls on MXU
        q = qkv_ref[:, h * d:(h + 1) * d]
        k = qkv_ref[:, H + h * d:H + (h + 1) * d]
        v = qkv_ref[:, 2 * H + h * d:2 * H + (h + 1) * d]
        s = lax.dot_general(q, k, (((1,), (1,)), ((), ())),    # q @ k^T, fp32 accumulate
                            preferred_element_type=jnp.float32) * scale + m
        s = s - jnp.max(s, axis=-1, keepdims=True)
        p = jnp.exp(s)
        l = jnp.sum(p, axis=-1, keepdims=True)
        ctx = jnp.dot(p.astype(v.dtype), v, preferred_element_type=jnp.float32)
        # Deferred softmax normalization: (S,d) multiplies + EUP approx reciprocal
        # instead of (S,S) divides.
        ctx_heads.append(ctx * pl.reciprocal(l, approx=True))
    out = ctx_heads[0] if num_heads == 1 else jnp.concatenate(ctx_heads, axis=-1)
    o_ref[...] = out.astype(o_ref.dtype)                       # single lane-dense store
    # TODO(synk): attention-probs dropout omitted (inference / eval mode => identity).
    # TODO(synk): for long sequences switch to a flash-style KV-tiled grid (online
    # softmax m/l/acc scratch) so VMEM stays O(S*d) instead of O(S^2).


def _self_output_ffn_kernel(ctx_ref, x_ref, wo_ref, bo_ref, g1_ref, be1_ref,
                            w1_ref, b1_ref, w2_ref, b2_ref, g2_ref, be2_ref,
                            o_ref, attn_scr, acc_scr, *, eps):
    # Fused BertSelfOutput + BertIntermediate + BertOutput for one row tile.
    # Grid: (row_tiles, I // tI); the FFN intermediate dim is streamed on axis 1.
    j = pl.program_id(1)

    @pl.when(j == 0)
    def _():
        # BertSelfOutput: LN(ctx @ Wo + bo + x); dropout = identity at inference.
        h = jnp.dot(ctx_ref[...], wo_ref[...], preferred_element_type=jnp.float32)
        h = h + bo_ref[...] + x_ref[...].astype(jnp.float32)
        attn_scr[...] = _layernorm(h, g1_ref[...], be1_ref[...], eps)
        acc_scr[...] = jnp.zeros_like(acc_scr)

    # BertIntermediate tile + partial BertOutput matmul, accumulated in fp32.
    a_bf16 = attn_scr[...].astype(jnp.bfloat16)
    h1 = jnp.dot(a_bf16, w1_ref[...], preferred_element_type=jnp.float32) + b1_ref[...]
    h1 = _gelu(h1)
    acc_scr[...] += jnp.dot(h1.astype(jnp.bfloat16), w2_ref[...],
                            preferred_element_type=jnp.float32)

    @pl.when(j == pl.num_programs(1) - 1)
    def _():
        out = acc_scr[...] + b2_ref[...] + attn_scr[...]
        o_ref[...] = _layernorm(out, g2_ref[...], be2_ref[...], eps).astype(o_ref.dtype)


# --------------------------------------------------------------------------- wrappers

def _qkv_proj(x2d, w_t, b_row, tm):
    N, H = x2d.shape
    O = w_t.shape[1]
    return pl.pallas_call(
        _qkv_kernel,
        out_shape=jax.ShapeDtypeStruct((N, O), jnp.bfloat16),
        grid_spec=pltpu.PrefetchScalarGridSpec(
            num_scalar_prefetch=0,
            grid=(N // tm,),
            in_specs=[
                pl.BlockSpec((tm, H), lambda i: (i, 0)),   # activation rows
                # TODO(synk): single-buffer these constant-index operands via
                # pipeline_mode=pl.Buffered(1) once universally supported.
                pl.BlockSpec((H, O), lambda i: (0, 0)),    # fused QKV weight (resident, bf16)
                pl.BlockSpec((1, O), lambda i: (0, 0)),    # fused QKV bias
            ],
            out_specs=pl.BlockSpec((tm, O), lambda i: (i, 0)),
        ),
        compiler_params=pltpu.CompilerParams(
            dimension_semantics=("parallel",),
            vmem_limit_bytes=_VMEM_LIMIT),
    )(x2d, w_t, b_row)


def _attention(qkv3, mask3, num_heads, scale):
    B, S, H3 = qkv3.shape
    H = H3 // 3
    kern = functools.partial(_attn_kernel, num_heads=num_heads, scale=scale)
    return pl.pallas_call(
        kern,
        out_shape=jax.ShapeDtypeStruct((B, S, H), jnp.bfloat16),
        grid_spec=pltpu.PrefetchScalarGridSpec(
            num_scalar_prefetch=0,
            grid=(B,),
            in_specs=[
                pl.BlockSpec((None, S, H3), lambda b: (b, 0, 0)),  # fused qkv, one batch
                pl.BlockSpec((None, 1, S), lambda b: (b, 0, 0)),   # additive mask row
            ],
            out_specs=pl.BlockSpec((None, S, H), lambda b: (b, 0, 0)),
        ),
        compiler_params=pltpu.CompilerParams(
            dimension_semantics=("parallel",),
            vmem_limit_bytes=_VMEM_LIMIT),
    )(qkv3, mask3)


def _self_output_ffn(ctx2d, x2d, p, eps, tm, tI):
    N, H = x2d.shape
    I = p["w1_t"].shape[1]
    kern = functools.partial(_self_output_ffn_kernel, eps=eps)
    const = lambda i, j: (0, 0)
    return pl.pallas_call(
        kern,
        out_shape=jax.ShapeDtypeStruct((N, H), jnp.float32),
        grid_spec=pltpu.PrefetchScalarGridSpec(
            num_scalar_prefetch=0,
            grid=(N // tm, I // tI),
            in_specs=[
                pl.BlockSpec((tm, H), lambda i, j: (i, 0)),   # attention context rows (bf16)
                pl.BlockSpec((tm, H), lambda i, j: (i, 0)),   # residual rows (f32)
                pl.BlockSpec((H, H), const),                  # Wo^T (bf16, resident)
                pl.BlockSpec((1, H), const),                  # bo
                pl.BlockSpec((1, H), const),                  # LN1 gamma
                pl.BlockSpec((1, H), const),                  # LN1 beta
                pl.BlockSpec((H, tI), lambda i, j: (0, j)),   # W1^T tile (streamed over I)
                pl.BlockSpec((1, tI), lambda i, j: (0, j)),   # b1 tile
                pl.BlockSpec((tI, H), lambda i, j: (j, 0)),   # W2^T tile (streamed over I)
                pl.BlockSpec((1, H), const),                  # b2
                pl.BlockSpec((1, H), const),                  # LN2 gamma
                pl.BlockSpec((1, H), const),                  # LN2 beta
            ],
            out_specs=pl.BlockSpec((tm, H), lambda i, j: (i, 0)),
            scratch_shapes=[pltpu.VMEM((tm, H), jnp.float32),   # attn (post-LN1, residual)
                            pltpu.VMEM((tm, H), jnp.float32)],  # W2 accumulator
        ),
        compiler_params=pltpu.CompilerParams(
            dimension_semantics=("parallel", "arbitrary"),
            vmem_limit_bytes=_VMEM_LIMIT),
    )(ctx2d, x2d, p["wo_t"], p["bo"], p["ln1_g"], p["ln1_b"],
      p["w1_t"], p["b1"], p["w2_t"], p["b2"], p["ln2_g"], p["ln2_b"])


# --------------------------------------------------------------------------- encoder

def bert_layer_forward(x2d, mask3, p, B, S_pad, num_heads, eps, tm, tI):
    N, H = x2d.shape
    d = H // num_heads
    qkv = _qkv_proj(x2d, p["wqkv_t"], p["bqkv"], tm)                  # (N, 3H) bf16
    ctx = _attention(qkv.reshape(B, S_pad, 3 * H), mask3,
                     num_heads, 1.0 / math.sqrt(d))                   # (B, S_pad, H) bf16
    return _self_output_ffn(ctx.reshape(N, H), x2d, p, eps, tm, tI)   # (N, H) f32


def _prep_layer_params(lp):
    # Cast matmul weights to bf16 once per call; biases / LN params stay fp32 rows.
    H = lp["wo_t"].shape[0]
    I = lp["w1_t"].shape[1]
    bf16 = jnp.bfloat16
    f32 = jnp.float32
    return {
        "wqkv_t": lp["wqkv_t"].astype(bf16),
        "bqkv": lp["bqkv"].reshape(1, -1).astype(f32),
        "wo_t": lp["wo_t"].astype(bf16),
        "bo": lp["bo"].reshape(1, H).astype(f32),
        "ln1_g": lp["ln1_g"].reshape(1, H).astype(f32),
        "ln1_b": lp["ln1_b"].reshape(1, H).astype(f32),
        "w1_t": lp["w1_t"].astype(bf16),
        "b1": lp["b1"].reshape(1, I).astype(f32),
        "w2_t": lp["w2_t"].astype(bf16),
        "b2": lp["b2"].reshape(1, H).astype(f32),
        "ln2_g": lp["ln2_g"].reshape(1, H).astype(f32),
        "ln2_b": lp["ln2_b"].reshape(1, H).astype(f32),
    }


def bert_encoder_forward(hidden_states, attention_mask, layer_params, *,
                         num_heads, eps=1e-12, output_all_encoded_layers=True):
    """hidden_states: (B, S, H) f32; attention_mask: extended additive mask (B, 1, 1, S)."""
    # TODO(synk): checkpoint_activations is a training-only memory optimization;
    # the forward math is identical, so it is not implemented here.
    B, S, H = hidden_states.shape
    S_pad = _round_up(S, 8)
    x = hidden_states
    mask = attention_mask.astype(jnp.float32)
    if S_pad != S:
        # Pad ONCE at encoder entry; padded key columns are masked, padded query rows
        # are sliced off only when materializing per-layer outputs.
        x = jnp.pad(x, ((0, 0), (0, S_pad - S), (0, 0)))
        mask = jnp.pad(mask, ((0, 0), (0, 0), (0, 0), (0, S_pad - S)),
                       constant_values=-10000.0)
    mask3 = mask.reshape(B, 1, S_pad)
    x2d = x.reshape(B * S_pad, H).astype(jnp.float32)

    tm = _pick_row_tile(B * S_pad)
    tI = _pick_inner_tile(layer_params[0]["w1_t"].shape[1])
    prepped = [_prep_layer_params(lp) for lp in layer_params]

    all_encoder_layers = []
    for p in prepped:
        x2d = bert_layer_forward(x2d, mask3, p, B, S_pad, num_heads, eps, tm, tI)
        if output_all_encoded_layers:
            all_encoder_layers.append(x2d.reshape(B, S_pad, H)[:, :S])
    if not output_all_encoded_layers:
        all_encoder_layers.append(x2d.reshape(B, S_pad, H)[:, :S])
    return all_encoder_layers


# --------------------------------------------------------------------------- reference

def reference_bert_encoder(hidden_states, attention_mask, layer_params, *,
                           num_heads, eps=1e-12):
    B, S, H = hidden_states.shape
    d = H // num_heads
    x = hidden_states
    outs = []
    for lp in layer_params:
        qkv = jnp.einsum("bsh,ho->bso", x, lp["wqkv_t"]) + lp["bqkv"]
        q, k, v = jnp.split(qkv, 3, axis=-1)

        def heads(t):
            return t.reshape(B, S, num_heads, d).transpose(0, 2, 1, 3)

        qh, kh, vh = heads(q), heads(k), heads(v)
        s = jnp.einsum("bhqd,bhkd->bhqk", qh, kh) / math.sqrt(d) + attention_mask
        p = jax.nn.softmax(s, axis=-1)
        ctx = jnp.einsum("bhqk,bhkd->bhqd", p, vh).transpose(0, 2, 1, 3).reshape(B, S, H)
        h = jnp.einsum("bsh,ho->bso", ctx, lp["wo_t"]) + lp["bo"]
        h = _layernorm(h + x, lp["ln1_g"], lp["ln1_b"], eps)
        inter = _gelu(jnp.einsum("bsh,hi->bsi", h, lp["w1_t"]) + lp["b1"])
        out = jnp.einsum("bsi,ih->bsh", inter, lp["w2_t"]) + lp["b2"]
        x = _layernorm(out + h, lp["ln2_g"], lp["ln2_b"], eps)
        outs.append(x)
    return outs


# --------------------------------------------------------------------------- demo

def _make_layer_params(key, H, I):
    ks = jax.random.split(key, 14)
    std = 0.02
    # torch.nn.Linear weights are (out, in); pre-transpose once here so kernels never
    # transpose on-chip and outputs stay lane-dense.
    wq = jax.random.normal(ks[0], (H, H), jnp.float32) * std
    wk = jax.random.normal(ks[1], (H, H), jnp.float32) * std
    wv = jax.random.normal(ks[2], (H, H), jnp.float32) * std
    bq = jax.random.normal(ks[3], (H,), jnp.float32) * std
    bk = jax.random.normal(ks[4], (H,), jnp.float32) * std
    bv = jax.random.normal(ks[5], (H,), jnp.float32) * std
    wo = jax.random.normal(ks[6], (H, H), jnp.float32) * std
    bo = jax.random.normal(ks[7], (H,), jnp.float32) * std
    w1 = jax.random.normal(ks[8], (I, H), jnp.float32) * std
    b1 = jax.random.normal(ks[9], (I,), jnp.float32) * std
    w2 = jax.random.normal(ks[10], (H, I), jnp.float32) * std
    b2 = jax.random.normal(ks[11], (H,), jnp.float32) * std
    return {
        "wqkv_t": jnp.concatenate([wq.T, wk.T, wv.T], axis=1),   # (H, 3H)
        "bqkv": jnp.concatenate([bq, bk, bv]),                   # (3H,)
        "wo_t": wo.T, "bo": bo,
        "ln1_g": 1.0 + 0.1 * jax.random.normal(ks[12], (H,), jnp.float32),
        "ln1_b": 0.1 * jax.random.normal(ks[13], (H,), jnp.float32),
        "w1_t": w1.T, "b1": b1,
        "w2_t": w2.T, "b2": b2,
        "ln2_g": jnp.ones((H,), jnp.float32),
        "ln2_b": jnp.zeros((H,), jnp.float32),
    }


if __name__ == "__main__":
    B, S, H = 2, 8, 32
    num_heads = 2
    I = 4 * H
    num_layers = 2
    eps = 1e-12

    key = jax.random.PRNGKey(0)
    k_x, *k_layers = jax.random.split(key, 1 + num_layers)

    hidden_states = jax.random.normal(k_x, (B, S, H), dtype=jnp.float32)
    layer_params = [_make_layer_params(k, H, I) for k in k_layers]

    # Extended additive attention mask (B, 1, 1, S): 0 for valid, -10000 for padding.
    pad_mask = jnp.ones((B, S), dtype=jnp.float32).at[1, S - 2:].set(0.0)
    attn_mask_ext = (1.0 - pad_mask)[:, None, None, :] * -10000.0

    outs = bert_encoder_forward(hidden_states, attn_mask_ext, layer_params,
                                num_heads=num_heads, eps=eps,
                                output_all_encoded_layers=True)
    outs = jax.block_until_ready(outs)

    refs = reference_bert_encoder(hidden_states, attn_mask_ext, layer_params,
                                  num_heads=num_heads, eps=eps)

    assert len(outs) == num_layers
    for li, (o, r) in enumerate(zip(outs, refs)):
        assert o.shape == (B, S, H)
        err = float(jnp.max(jnp.abs(o - r)))
        # bf16 matmul inputs vs fp32 reference => relaxed (but tight-for-bf16) tolerance.
        assert jnp.allclose(o, r, atol=2.5e-2, rtol=2.5e-2), (
            f"layer {li} mismatch vs fp32 reference (max abs err {err})")

    print("KERNEL_OK")
</pallas_src>

<mosaic_0001>
module attributes {stable_mosaic.version = 11 : i64} {
  func.func @_qkv_kernel(%arg0: i32, %arg1: memref<16x32xf32, #tpu.memory_space<vmem>>, %arg2: memref<32x96xbf16, #tpu.memory_space<vmem>>, %arg3: memref<1x96xf32, #tpu.memory_space<vmem>>, %arg4: memref<16x96xbf16, #tpu.memory_space<vmem>>) attributes {dimension_semantics = [#tpu.dimension_semantics<parallel>], iteration_bounds = array<i64: 1>, scalar_prefetch = 0 : i64, scratch_operands = 0 : i64, tpu.core_type = #tpu.core_type<tc>, window_params = [{transform_indices = @transform_0, window_bounds = array<i64: 16, 32>}, {pipeline_mode = #tpu.pipeline_mode<synchronous>, transform_indices = @transform_1, window_bounds = array<i64: 32, 96>}, {pipeline_mode = #tpu.pipeline_mode<synchronous>, transform_indices = @transform_2, window_bounds = array<i64: 1, 96>}, {transform_indices = @transform_3, window_bounds = array<i64: 16, 96>}]} {
    %c0 = arith.constant 0 : index
    %c0_0 = arith.constant 0 : index
    %0 = vector.load %arg1[%c0, %c0_0] : memref<16x32xf32, #tpu.memory_space<vmem>>, vector<16x32xf32>
    %1 = arith.truncf %0 : vector<16x32xf32> to vector<16x32xbf16>
    %c0_1 = arith.constant 0 : index
    %c0_2 = arith.constant 0 : index
    %2 = vector.load %arg2[%c0_1, %c0_2] : memref<32x96xbf16, #tpu.memory_space<vmem>>, vector<32x96xbf16>
    %cst = arith.constant dense<0.000000e+00> : vector<16x96xf32>
    %3 = tpu.matmul %1, %2, %cst {dimension_numbers = #tpu.dot_dimension_numbers<[1], [0], [0], [1], [0, 0, 1, 1], [], []>} : vector<16x32xbf16>, vector<32x96xbf16>, vector<16x96xf32> -> vector<16x96xf32>
    %c0_3 = arith.constant 0 : index
    %c0_4 = arith.constant 0 : index
    %4 = vector.load %arg3[%c0_3, %c0_4] : memref<1x96xf32, #tpu.memory_space<vmem>>, vector<1x96xf32>
    %5 = vector.broadcast %4 : vector<1x96xf32> to vector<16x96xf32>
    %6 = arith.addf %3, %5 : vector<16x96xf32>
    %7 = arith.truncf %6 : vector<16x96xf32> to vector<16x96xbf16>
    %c0_5 = arith.constant 0 : index
    %c0_6 = arith.constant 0 : index
    %8 = vector.load %arg4[%c0_5, %c0_6] : memref<16x96xbf16, #tpu.memory_space<vmem>>, vector<16x96xbf16>
    tpu.vector_store %arg4[%c0_5, %c0_6], %7 {strides = array<i32>} : memref<16x96xbf16, #tpu.memory_space<vmem>>, vector<16x96xbf16>,
    return
  }
  func.func @transform_0(%arg0: i32) -> (i32, i32) {
    %c0_i32 = arith.constant 0 : i32
    %c0_i32_0 = arith.constant 0 : i32
    return %arg0, %c0_i32 : i32, i32
  }
  func.func @transform_1(%arg0: i32) -> (i32, i32) {
    %c0_i32 = arith.constant 0 : i32
    %c0_i32_0 = arith.constant 0 : i32
    %c0_i32_1 = arith.constant 0 : i32
    return %c0_i32, %c0_i32_0 : i32, i32
  }
  func.func @transform_2(%arg0: i32) -> (i32, i32) {
    %c0_i32 = arith.constant 0 : i32
    %c0_i32_0 = arith.constant 0 : i32
    %c0_i32_1 = arith.constant 0 : i32
    return %c0_i32, %c0_i32_0 : i32, i32
  }
  func.func @transform_3(%arg0: i32) -> (i32, i32) {
    %c0_i32 = arith.constant 0 : i32
    %c0_i32_0 = arith.constant 0 : i32
    return %arg0, %c0_i32 : i32, i32
  }
}

</mosaic_0001>

<llo_original>
// kernel: tpu_custom_call.1
$region0: #{tpu_custom_call.1}
  #allocation0 [shape = 'u32[]', space=smem, size = 0x4, offset = 0x4, fixed_abs, tag = 'smem constant byte address 0x4 - core index']
  #allocation1 [shape = 'u32[144,128]{1,0:T(1,128)}', space=vmem, size = 0x12000, scoped, tag = 'internal scratch']
  %s0 = inlined_call_operand.hbm [shape: f32[16,32], index: 0, kind: input, shape index: {}]
  %s1 = inlined_call_operand.hbm [shape: bf16[32,96], index: 1, kind: input, shape index: {}]
  %s2 = inlined_call_operand.vmem [shape: f32[1,96], index: 2, kind: input, shape index: {}]
  %s3 = inlined_call_operand.hbm [shape: bf16[16,96], index: 3, kind: output, shape index: {}]
  %s4 = sld [smem:[#allocation0]]
  $region30: #{tpu_custom_call.1} parent=0
    _
  %s6 = ssub.s32 1, %s4
  %s7 = scalar_select 0, %s6, %s4
  $region1: #{tpu_custom_call.1} parent=0
    #allocation2 [shape = 'u8[8192]{0}', space=vmem, size = 0x2000, scoped, tag = 'input window, operand 0, single buffered']
    #allocation3 [shape = 's32[1]{0}', space=sflag, size = 0x4, scoped, tag = 'scoped memory for tpu_custom_call.1']
    #allocation4 [shape = 's32[1]{0}', space=sflag, size = 0x4, scoped, tag = 'scoped memory for tpu_custom_call.1']
    #allocation5 [shape = 'u8[8192]{0}', space=vmem, size = 0x2000, scoped, tag = 'input window, operand 1, single buffered']
    #allocation6 [shape = 's32[1]{0}', space=sflag, size = 0x4, scoped, tag = 'scoped memory for tpu_custom_call.1']
    #allocation7 [shape = 'u8[4096]{0}', space=vmem, size = 0x1000, scoped, tag = 'output window, operand 0, single buffered']
    %8 = vsyncpa [#allocation3], 0
    %9 = vsyncpa [#allocation6], 0
    %10 = vsyncpa [#allocation4], 0
    // Predicated region
    $region2: #{tpu_custom_call.1} parent=1 // pred_check
      _
    $region3: #{tpu_custom_call.1} parent=1 // pred_check_branch
      %12 = sbr.rel (0) target = $region5
    $region4: #{tpu_custom_call.1} parent=1 // pred_region
      %s14 = ssub.s32 256, 256
      %15 = vsyncadd [#allocation3], %s14
      %s16 = sshll.u32 [#allocation2], 4
      %s17 = int_to_ptr.vmem [resolvable:$true] %s16
      %22 = dma.hbm_to_vmem [thread:$0]  %s0, 256, %s17, [#allocation3], 128, 128, 8
    $region5: #{tpu_custom_call.1} parent=1 // pred_fallthru
      _
    // Predicated region
    $region6: #{tpu_custom_call.1} parent=1 // pred_check
      _
    $region7: #{tpu_custom_call.1} parent=1 // pred_check_branch
      %24 = sbr.rel (0) target = $region9
    $region8: #{tpu_custom_call.1} parent=1 // pred_region
      %s26 = ssub.s32 256, 256
      %27 = vsyncadd [#allocation6], %s26
      %s28 = sshll.u32 [#allocation5], 4
      %s29 = int_to_ptr.vmem [resolvable:$true] %s28
      %34 = dma.hbm_to_vmem [thread:$0]  %s1, 256, %s29, [#allocation6], 64, 64, 4
    $region9: #{tpu_custom_call.1} parent=1 // pred_fallthru
      _
    // Predicated region
    $region10: #{tpu_custom_call.1} parent=1 // pred_check
      _
    $region11: #{tpu_custom_call.1} parent=1 // pred_check_branch
      %36 = sbr.rel (0) target = $region13
    $region12: #{tpu_custom_call.1} parent=1 // pred_region
      _
    $region13: #{tpu_custom_call.1} parent=1 // pred_fallthru
      _
    // Predicated region
    $region14: #{tpu_custom_call.1} parent=1 // pred_check
      _
    $region15: #{tpu_custom_call.1} parent=1 // pred_check_branch
      %38 = sbr.rel (0) target = $region17
    $region16: #{tpu_custom_call.1} parent=1 // pred_region
      %39 = dma.done [#allocation3], 256
    $region17: #{tpu_custom_call.1} parent=1 // pred_fallthru
      _
    // Predicated region
    $region18: #{tpu_custom_call.1} parent=1 // pred_check
      _
    $region19: #{tpu_custom_call.1} parent=1 // pred_check_branch
      %41 = sbr.rel (0) target = $region21
    $region20: #{tpu_custom_call.1} parent=1 // pred_region
      %42 = dma.done [#allocation6], 256
    $region21: #{tpu_custom_call.1} parent=1 // pred_fallthru
      _
    %v44 = vld [vmem:[#allocation2] sm:$0xff]
    %v45 = vld [vmem:[#allocation2 + $0x8] sm:$0xff]
    %v46 = vpack.c.bf16 %v45, %v44
    %v47 = vld [vmem:[#allocation5] sm:$0xf]
    %v48 = vld [vmem:[#allocation5 + $0x4] sm:$0xf]
    %v49 = vld [vmem:[#allocation5 + $0x8] sm:$0xf]
    %v50 = vld [vmem:[#allocation5 + $0xc] sm:$0xf]
    %v51 = vld [vmem:[%s2] sm:$0x1]
    %v53 = vlaneseq
    %v54 = vshrl.u32 %v53, 7
    %v55 = vsub.s32 0, %v54
    %v56 = vrot.slane %v51, %v55
    %v62 = vunpack.c.l.b16 %v47
    %v63 = vunpack.c.l.b16 %v48
    %v64 = vunpack.c.l.b16 %v49
    %v65 = vunpack.c.l.b16 %v50
    %v66 = vpack.c.b16 %v63, %v62
    %v67 = vpack.c.b16 %v65, %v64
    %vm70 = vcmask 261120
    %v72 = vsel %vm70, %v46, 0
    %74 = vmatprep.subr.bf16.mxu0 0
    %75 = vmatpush1.bf16.msra.mxu0 %v66
    %76 = vmatprep.subr.bf16.mxu0 0
    %77 = vmatpush1.bf16.msra.mxu0 %v67
    %78 = vmatprep.subr.bf16.mxu0 0
    %79 = vmatpush1.bf16.msra.mxu0 0
    %80 = vmatprep.subr.bf16.mxu0 0
    %81 = vmatpush1.bf16.msra.mxu0 0
    %82 = vmatprep.subr.bf16.mxu0 0
    %83 = vmatpush1.bf16.msra.mxu0 0
    %84 = vmatprep.subr.bf16.mxu0 0
    %85 = vmatpush1.bf16.msra.mxu0 0
    %86 = vmatprep.subr.bf16.mxu0 0
    %87 = vmatpush1.bf16.msra.mxu0 0
    %88 = vmatprep.subr.bf16.mxu0 0
    %89 = vmatpush1.bf16.msra.mxu0 0
    %90 = vmatprep.subr.bf16.mxu0 0
    %91 = vmatpush1.bf16.msra.mxu0 0
    %92 = vmatprep.subr.bf16.mxu0 0
    %93 = vmatpush1.bf16.msra.mxu0 0
    %94 = vmatprep.subr.bf16.mxu0 0
    %95 = vmatpush1.bf16.msra.mxu0 0
    %96 = vmatprep.subr.bf16.mxu0 0
    %97 = vmatpush1.bf16.msra.mxu0 0
    %98 = vmatprep.subr.bf16.mxu0 0
    %99 = vmatpush1.bf16.msra.mxu0 0
    %100 = vmatprep.subr.bf16.mxu0 0
    %101 = vmatpush1.bf16.msra.mxu0 0
    %102 = vmatprep.subr.bf16.mxu0 0
    %103 = vmatpush1.bf16.msra.mxu0 0
    %104 = vmatprep.subr.bf16.mxu0 0
    %105 = vmatpush1.bf16.msra.mxu0 0
    %106 = vmatprep.mubr.bf16.mxu0 0
    %107 = vmatmul.mubr.bf16.gmra.mrb[0].mxu0 %v72
    %v108 = vpop.f32.mrb[0].mxu0
    %v109 = vadd.f32 %v56, %v108
    %v110 = vpop.f32.mrb[0].mxu0
    %v111 = vpop.f32.mrb[0].mxu0
    %v112 = vadd.f32 %v56, %v111
    %v113 = vpop.f32.mrb[0].mxu0
    %114 = vdwg.mxu0
    %v115 = vpack.c.bf16 %v112, %v109
    %v117 = vunpack.c.l.b16 %v115
    %v118 = vunpack.c.h.b16 %v115
    %v119 = vpack.c.b16 %v117, %v117
    %v120 = vpack.c.b16 %v118, %v118
    %vm123 = vcmask 781312
    %124 = vst.msk [vmem:[#allocation7] sm:$0xf] %vm123, %v119
    %125 = vst.msk [vmem:[#allocation7 + $0x4] sm:$0xf] %vm123, %v120
    // Predicated region
    $region22: #{tpu_custom_call.1} parent=1 // pred_check
      _
    $region23: #{tpu_custom_call.1} parent=1 // pred_check_branch
      %127 = sbr.rel (0) target = $region25
    $region24: #{tpu_custom_call.1} parent=1 // pred_region
      %s129 = ssub.s32 128, 128
      %130 = vsyncadd [#allocation4], %s129
      %s131 = sshll.u32 [#allocation7], 4
      %s132 = int_to_ptr.vmem [resolvable:$true] %s131
      %137 = dma.vmem_to_hbm [thread:$0]  %s132, 128, %s3, [#allocation4], 64, 64, 4
    $region25: #{tpu_custom_call.1} parent=1 // pred_fallthru
      _
    // Predicated region
    $region26: #{tpu_custom_call.1} parent=1 // pred_check
      _
    $region27: #{tpu_custom_call.1} parent=1 // pred_check_branch
      %139 = sbr.rel (0) target = $region29
    $region28: #{tpu_custom_call.1} parent=1 // pred_region
      %140 = dma.done [#allocation4], 128
    $region29: #{tpu_custom_call.1} parent=1 // pred_fallthru
      _
    %141 = vsyncpa [#allocation3], 1
    %142 = vsyncpa [#allocation6], 1
    %143 = vsyncpa [#allocation4], 1

</llo_original>
